<compile_context>
chip_gen: v7x
topology: tpu7x:2x2x1
jax: 0.10.0
libtpu: 0.0.40
codegen_flags: <defaults>
</compile_context>

<pallas_src>
import jax
import jax.numpy as jnp
from jax.experimental import pallas as pl
from jax.experimental.pallas import tpu as pltpu


def _mc_mse_kernel(roww_ref, outs_ref, tgts_ref, partial_ref):
    """One grid step: sigmoid + squared error + weighted partial sum.

    roww_ref    : VMEM (tile_r, 1) f32  -> per-row weight (0 marks padded rows)
    outs_ref    : VMEM (tile_r, H*W)    -> raw model outputs (pre-activation)
    tgts_ref    : VMEM (tile_r, H*W)    -> one-hot targets
    partial_ref : VMEM (1, 8, 128) f32  -> this block's weighted SSE (broadcast)
    """
    # Native-dtype transport, f32 math in-vreg.
    o = outs_ref[...].astype(jnp.float32)
    t = tgts_ref[...].astype(jnp.float32)

    # sigmoid(x) = 0.5 * (tanh(x/2) + 1): a single EUP push per element
    # instead of exp + divide.
    preds = 0.5 * (jnp.tanh(0.5 * o) + 1.0)
    diff = t - preds
    per_row = jnp.sum(diff * diff, axis=-1, keepdims=True)        # (tile_r, 1)

    w = roww_ref[...]                                             # (tile_r, 1)
    # w == 0 marks cdiv-remainder (out-of-range) rows; the where() also
    # squashes any garbage (NaN/Inf) those rows may contain in VMEM.
    contrib = jnp.where(w > 0.0, per_row * w, jnp.float32(0.0))

    # Broadcast the scalar into an (8,128)-aligned tile so the store is
    # unmasked and each grid step owns an independent output block.
    partial_ref[...] = jnp.full(partial_ref.shape, jnp.sum(contrib), jnp.float32)


def _pick_budgets():
    """(block_bytes, vmem_limit_bytes) tuned to the local TPU generation."""
    try:
        phys = int(pltpu.get_tpu_info().vmem_capacity_bytes)
    except Exception:
        phys = 64 * 1024 * 1024            # conservative fallback (v7x per-TC)
    if phys >= 128 * 1024 * 1024:          # v5e / v6e: 128 MiB physical VMEM
        return 10 * 1024 * 1024, 64 * 1024 * 1024
    return 4 * 1024 * 1024, 32 * 1024 * 1024   # v7x: 64 MiB per TensorCore


def _sublane_pack(itemsize):
    # Second-minor block dim granularity: 8 for 4-byte dtypes, 16 for packed
    # sub-32-bit dtypes (bf16/fp16/int8).
    return 8 if itemsize >= 4 else 16


def _pick_tile_rows(n_rows, row_bytes, block_bytes, vmem_limit_bytes, pack):
    """Rows per block: budget-sized, (8,128)-legal, >=2 grid steps when possible."""
    headroom = 2 * 1024 * 1024
    # Largest row count that keeps 2 inputs x 2 pipeline buffers under the limit.
    fit = max(1, (vmem_limit_bytes - headroom) // (4 * row_bytes))
    tile = min(max(1, block_bytes // max(1, row_bytes)), fit)
    if n_rows >= 2 * pack:
        # Leave at least two grid steps so v7x can use both TensorCores.
        tile = min(tile, pl.cdiv(n_rows, 2))
    if tile >= n_rows:
        return n_rows                       # single full-extent block (always legal)
    return max(pack, (tile // pack) * pack)


def multiclass_mse_loss(outputs, targets, dm_weight=1.0, bp_weight=1.0,
                        block_bytes=None, vmem_limit_bytes=None):
    """Pallas wrapper. outputs/targets: [n_obs, n_classes, n_pix, n_pix]."""
    n_obs, n_classes, h, w = outputs.shape
    assert targets.shape == outputs.shape
    if n_classes not in (3, 4):
        # The PyTorch module only defines the 3- and 4-class cases.
        raise ValueError(f"multiclass_MSE_loss requires 3 or 4 classes, got {n_classes}")

    auto_block, auto_limit = _pick_budgets()
    if block_bytes is None:
        block_bytes = auto_block
    if vmem_limit_bytes is None:
        vmem_limit_bytes = auto_limit

    hw = h * w
    n_rows = n_obs * n_classes
    # Dense lane-major 2-D view: one row per (obs, class), spatial on lanes.
    # Free for contiguous NCHW; removes all sublane padding from the blocks.
    outs = outputs.reshape(n_rows, hw)
    tgts = targets.reshape(n_rows, hw)

    itemsize = max(outs.dtype.itemsize, tgts.dtype.itemsize)
    pack = _sublane_pack(itemsize)
    hw_lanes = pl.cdiv(hw, 128) * 128                 # lane-rounded accounting
    row_bytes = hw_lanes * itemsize
    tile_r = _pick_tile_rows(n_rows, row_bytes, block_bytes, vmem_limit_bytes, pack)
    num_blocks = pl.cdiv(n_rows, tile_r)

    # 2 streamed inputs x double-buffering must fit the scoped VMEM limit.
    if 4 * tile_r * row_bytes > vmem_limit_bytes - 2 * 1024 * 1024:
        # TODO(synk): tile the spatial axis (with partial-sum accumulation)
        # when a single (H*W) row no longer fits the VMEM budget.
        raise ValueError("image too large for a single-row VMEM block")

    # Per-row weights.  The PyTorch forward applies dm/bp weights twice, so
    # those classes are effectively weighted by weight**2.  Zero-padded to the
    # cdiv grid: zero marks invalid (remainder) rows for the kernel.
    one = jnp.float32(1.0)
    dm = jnp.asarray(dm_weight, jnp.float32)
    bp = jnp.asarray(bp_weight, jnp.float32)
    if n_classes == 3:
        class_w = jnp.stack([one, one, bp * bp])
    else:
        class_w = jnp.stack([one, dm * dm, one, bp * bp])
    row_w = jnp.tile(class_w, n_obs)
    row_w = jnp.pad(row_w, (0, num_blocks * tile_r - n_rows))
    row_w = row_w.reshape(num_blocks * tile_r, 1)

    partials = pl.pallas_call(
        _mc_mse_kernel,
        out_shape=jax.ShapeDtypeStruct((num_blocks, 8, 128), jnp.float32),
        grid=(num_blocks,),
        in_specs=[
            pl.BlockSpec((tile_r, 1), lambda i: (i, 0)),    # per-row weights
            pl.BlockSpec((tile_r, hw), lambda i: (i, 0)),   # outputs
            pl.BlockSpec((tile_r, hw), lambda i: (i, 0)),   # targets
        ],
        out_specs=pl.BlockSpec((1, 8, 128), lambda i: (i, 0, 0)),
        compiler_params=pltpu.CompilerParams(
            dimension_semantics=("parallel",),
            vmem_limit_bytes=vmem_limit_bytes,
        ),
    )(row_w, outs, tgts)

    # Tiny final reduction + the MSELoss mean normalization (sum / (H*W)).
    return jnp.sum(partials[:, 0, 0]) / jnp.float32(hw)


def _reference_loss(outputs, targets, dm_weight=1.0, bp_weight=1.0):
    """Pure-JAX reference matching the PyTorch forward exactly."""
    preds = jax.nn.sigmoid(outputs.astype(jnp.float32))
    per = jnp.mean((targets.astype(jnp.float32) - preds) ** 2, axis=(2, 3))  # (N, C)
    per_c = jnp.sum(per, axis=0)
    n_classes = outputs.shape[1]
    if n_classes == 3:
        return per_c[0] + per_c[1] + (bp_weight ** 2) * per_c[2]
    return (
        per_c[0]
        + (dm_weight ** 2) * per_c[1]
        + per_c[2]
        + (bp_weight ** 2) * per_c[3]
    )


if __name__ == "__main__":
    key = jax.random.PRNGKey(0)
    k_out, k_cls = jax.random.split(key)

    n_obs, n_classes, n_pix = 2, 4, 16

    # Model outputs before activation.
    outputs = jax.random.normal(k_out, (n_obs, n_classes, n_pix, n_pix), jnp.float32)
    # One-hot encoded targets along the class axis.
    cls_map = jax.random.randint(k_cls, (n_obs, n_pix, n_pix), 0, n_classes)
    targets = jax.nn.one_hot(cls_map, n_classes, axis=1, dtype=jnp.float32)

    dm_weight, bp_weight = 1.5, 2.0

    # 4-class, f32 transport.
    loss = jax.block_until_ready(multiclass_mse_loss(outputs, targets, dm_weight, bp_weight))
    ref = _reference_loss(outputs, targets, dm_weight, bp_weight)
    assert jnp.allclose(loss, ref, rtol=1e-5, atol=1e-5), (loss, ref)

    # 4-class, native bf16 transport (half the HBM bytes; f32 math in-kernel).
    o_bf, t_bf = outputs.astype(jnp.bfloat16), targets.astype(jnp.bfloat16)
    loss_bf = jax.block_until_ready(multiclass_mse_loss(o_bf, t_bf, dm_weight, bp_weight))
    ref_bf = _reference_loss(o_bf, t_bf, dm_weight, bp_weight)
    assert jnp.allclose(loss_bf, ref_bf, rtol=1e-3, atol=1e-3), (loss_bf, ref_bf)

    # 3-class path.
    out3, tgt3 = outputs[:, :3], targets[:, :3]
    loss3 = jax.block_until_ready(multiclass_mse_loss(out3, tgt3, dm_weight, bp_weight))
    ref3 = _reference_loss(out3, tgt3, dm_weight, bp_weight)
    assert jnp.allclose(loss3, ref3, rtol=1e-5, atol=1e-5), (loss3, ref3)

    # Multi-block cdiv grid with a masked remainder block: 9*4 = 36 rows with
    # forced 16-row tiles -> 3 grid steps, last block has 4 valid rows.
    k2o, k2c = jax.random.split(jax.random.PRNGKey(1))
    out_m = jax.random.normal(k2o, (9, 4, n_pix, n_pix), jnp.float32)
    cls_m = jax.random.randint(k2c, (9, n_pix, n_pix), 0, 4)
    tgt_m = jax.nn.one_hot(cls_m, 4, axis=1, dtype=jnp.float32)
    loss_m = jax.block_until_ready(
        multiclass_mse_loss(out_m, tgt_m, dm_weight, bp_weight, block_bytes=16 * 1024))
    ref_m = _reference_loss(out_m, tgt_m, dm_weight, bp_weight)
    assert jnp.allclose(loss_m, ref_m, rtol=1e-5, atol=1e-5), (loss_m, ref_m)

    print("KERNEL_OK")
</pallas_src>

<mosaic_0001>
module attributes {stable_mosaic.version = 11 : i64} {
  func.func @_mc_mse_kernel(%arg0: i32, %arg1: memref<8x1xf32, #tpu.memory_space<vmem>>, %arg2: memref<8x256xf32, #tpu.memory_space<vmem>>, %arg3: memref<8x256xf32, #tpu.memory_space<vmem>>, %arg4: memref<1x8x128xf32, #tpu.memory_space<vmem>>) attributes {dimension_semantics = [#tpu.dimension_semantics<parallel>], iteration_bounds = array<i64: 1>, scalar_prefetch = 0 : i64, scratch_operands = 0 : i64, tpu.core_type = #tpu.core_type<tc>, window_params = [{transform_indices = @transform_0, window_bounds = array<i64: 8, 1>}, {transform_indices = @transform_1, window_bounds = array<i64: 8, 256>}, {transform_indices = @transform_2, window_bounds = array<i64: 8, 256>}, {transform_indices = @transform_3, window_bounds = array<i64: 1, 8, 128>}]} {
    %c0 = arith.constant 0 : index
    %c0_0 = arith.constant 0 : index
    %0 = vector.load %arg2[%c0, %c0_0] : memref<8x256xf32, #tpu.memory_space<vmem>>, vector<8x256xf32>
    %c0_1 = arith.constant 0 : index
    %c0_2 = arith.constant 0 : index
    %1 = vector.load %arg3[%c0_1, %c0_2] : memref<8x256xf32, #tpu.memory_space<vmem>>, vector<8x256xf32>
    %cst = arith.constant 5.000000e-01 : f32
    %2 = vector.broadcast %cst : f32 to vector<8x256xf32>
    %3 = arith.mulf %2, %0 : vector<8x256xf32>
    %4 = math.tanh %3 : vector<8x256xf32>
    %cst_3 = arith.constant 1.000000e+00 : f32
    %5 = vector.broadcast %cst_3 : f32 to vector<8x256xf32>
    %6 = arith.addf %4, %5 : vector<8x256xf32>
    %cst_4 = arith.constant 5.000000e-01 : f32
    %7 = vector.broadcast %cst_4 : f32 to vector<8x256xf32>
    %8 = arith.mulf %7, %6 : vector<8x256xf32>
    %9 = arith.subf %1, %8 : vector<8x256xf32>
    %10 = arith.mulf %9, %9 : vector<8x256xf32>
    %cst_5 = arith.constant dense<0.000000e+00> : vector<8xf32>
    %11 = vector.multi_reduction <add>, %10, %cst_5 [1] : vector<8x256xf32> to vector<8xf32>
    %12 = vector.shape_cast %11 : vector<8xf32> to vector<8x1xf32>
    %c0_6 = arith.constant 0 : index
    %c0_7 = arith.constant 0 : index
    %13 = vector.load %arg1[%c0_6, %c0_7] : memref<8x1xf32, #tpu.memory_space<vmem>>, vector<8x1xf32>
    %cst_8 = arith.constant 0.000000e+00 : f32
    %14 = vector.broadcast %cst_8 : f32 to vector<8x1xf32>
    %15 = arith.cmpf ogt, %13, %14 : vector<8x1xf32>
    %16 = arith.mulf %12, %13 : vector<8x1xf32>
    %cst_9 = arith.constant 0.000000e+00 : f32
    %17 = vector.broadcast %cst_9 : f32 to vector<8x1xf32>
    %18 = arith.select %15, %16, %17 : vector<8x1xi1>, vector<8x1xf32>
    %19 = vector.shape_cast %18 : vector<8x1xf32> to vector<1x8x1xf32>
    %cst_10 = arith.constant dense<0.000000e+00> : vector<1xf32>
    %20 = vector.multi_reduction <add>, %19, %cst_10 [1, 2] : vector<1x8x1xf32> to vector<1xf32>
    %21 = vector.shape_cast %20 : vector<1xf32> to vector<1x1x1xf32>
    %22 = vector.extract %21[0, 0, 0] : f32 from vector<1x1x1xf32>
    %23 = vector.broadcast %22 : f32 to vector<1x8x128xf32>
    %c0_11 = arith.constant 0 : index
    %c0_12 = arith.constant 0 : index
    %c0_13 = arith.constant 0 : index
    %24 = vector.load %arg4[%c0_11, %c0_12, %c0_13] : memref<1x8x128xf32, #tpu.memory_space<vmem>>, vector<1x8x128xf32>
    tpu.vector_store %arg4[%c0_11, %c0_12, %c0_13], %23 {strides = array<i32>} : memref<1x8x128xf32, #tpu.memory_space<vmem>>, vector<1x8x128xf32>,
    return
  }
  func.func @transform_0(%arg0: i32) -> (i32, i32) {
    %c0_i32 = arith.constant 0 : i32
    %c0_i32_0 = arith.constant 0 : i32
    return %arg0, %c0_i32 : i32, i32
  }
  func.func @transform_1(%arg0: i32) -> (i32, i32) {
    %c0_i32 = arith.constant 0 : i32
    %c0_i32_0 = arith.constant 0 : i32
    return %arg0, %c0_i32 : i32, i32
  }
  func.func @transform_2(%arg0: i32) -> (i32, i32) {
    %c0_i32 = arith.constant 0 : i32
    %c0_i32_0 = arith.constant 0 : i32
    return %arg0, %c0_i32 : i32, i32
  }
  func.func @transform_3(%arg0: i32) -> (i32, i32, i32) {
    %c0_i32 = arith.constant 0 : i32
    %c0_i32_0 = arith.constant 0 : i32
    %c0_i32_1 = arith.constant 0 : i32
    return %arg0, %c0_i32, %c0_i32_0 : i32, i32, i32
  }
}

</mosaic_0001>

<llo_original>
// kernel: tpu_custom_call.1
$region0: #{tpu_custom_call.1}
  #allocation0 [shape = 'u32[]', space=smem, size = 0x4, offset = 0x4, fixed_abs, tag = 'smem constant byte address 0x4 - core index']
  #allocation1 [shape = 'u32[144,128]{1,0:T(1,128)}', space=vmem, size = 0x12000, scoped, tag = 'internal scratch']
  %s0 = inlined_call_operand.vmem [shape: f32[8,1], index: 0, kind: input, shape index: {}]
  %s1 = inlined_call_operand.hbm [shape: f32[8,256], index: 1, kind: input, shape index: {}]
  %s2 = inlined_call_operand.vmem [shape: f32[8,256], index: 2, kind: input, shape index: {}]
  %s3 = inlined_call_operand.hbm [shape: f32[1,8,128], index: 3, kind: output, shape index: {}]
  %s4 = sld [smem:[#allocation0]]
  $region26: #{tpu_custom_call.1} parent=0
    _
  %s6 = ssub.s32 1, %s4
  %s7 = scalar_select 0, %s6, %s4
  $region1: #{tpu_custom_call.1} parent=0
    #allocation2 [shape = 'u8[8192]{0}', space=vmem, size = 0x2000, scoped, tag = 'input window, operand 1, single buffered']
    #allocation3 [shape = 's32[1]{0}', space=sflag, size = 0x4, scoped, tag = 'scoped memory for tpu_custom_call.1']
    #allocation4 [shape = 's32[1]{0}', space=sflag, size = 0x4, scoped, tag = 'scoped memory for tpu_custom_call.1']
    #allocation5 [shape = 'u8[4096]{0}', space=vmem, size = 0x1000, scoped, tag = 'output window, operand 0, single buffered']
    %8 = vsyncpa [#allocation3], 0
    %9 = vsyncpa [#allocation4], 0
    // Predicated region
    $region2: #{tpu_custom_call.1} parent=1 // pred_check
      _
    $region3: #{tpu_custom_call.1} parent=1 // pred_check_branch
      %11 = sbr.rel (0) target = $region5
    $region4: #{tpu_custom_call.1} parent=1 // pred_region
      _
    $region5: #{tpu_custom_call.1} parent=1 // pred_fallthru
      _
    // Predicated region
    $region6: #{tpu_custom_call.1} parent=1 // pred_check
      _
    $region7: #{tpu_custom_call.1} parent=1 // pred_check_branch
      %13 = sbr.rel (0) target = $region9
    $region8: #{tpu_custom_call.1} parent=1 // pred_region
      %s15 = ssub.s32 256, 256
      %16 = vsyncadd [#allocation3], %s15
      %s18 = sshll.u32 [#allocation2], 4
      %s19 = int_to_ptr.vmem [resolvable:$true] %s18
      %21 = dma.hbm_to_vmem [thread:$0]  %s1, 256, %s19, [#allocation3]
    $region9: #{tpu_custom_call.1} parent=1 // pred_fallthru
      _
    // Predicated region
    $region10: #{tpu_custom_call.1} parent=1 // pred_check
      _
    $region11: #{tpu_custom_call.1} parent=1 // pred_check_branch
      %23 = sbr.rel (0) target = $region13
    $region12: #{tpu_custom_call.1} parent=1 // pred_region
      _
    $region13: #{tpu_custom_call.1} parent=1 // pred_fallthru
      _
    // Predicated region
    $region14: #{tpu_custom_call.1} parent=1 // pred_check
      _
    $region15: #{tpu_custom_call.1} parent=1 // pred_check_branch
      %25 = sbr.rel (0) target = $region17
    $region16: #{tpu_custom_call.1} parent=1 // pred_region
      %26 = dma.done [#allocation3], 256
    $region17: #{tpu_custom_call.1} parent=1 // pred_fallthru
      _
    %v27 = vld [vmem:[#allocation2] sm:$0xff]
    %v28 = vld [vmem:[#allocation2 + $0x8] sm:$0xff]
    %v29 = vld [vmem:[%s2] sm:$0xff]
    %v30 = vld [vmem:[%s2 + $0x8] sm:$0xff]
    %v31 = vmul.f32 %v27, 0.5
    %v32 = vmul.f32 %v28, 0.5
    %v33 = vtanh.pop %v31
    %v34 = vtanh.pop %v32
    %v35 = vadd.f32 %v33, 1.0
    %v36 = vadd.f32 %v34, 1.0
    %v37 = vmul.f32 %v35, 0.5
    %v38 = vmul.f32 %v36, 0.5
    %v39 = vsub.f32 %v29, %v37
    %v40 = vsub.f32 %v30, %v38
    %v41 = vmul.f32 %v39, %v39
    %v42 = vmul.f32 %v40, %v40
    %v43 = vadd.f32 %v41, %v42
    %44 = vadd.xlane.f32.xlu0 %v43
    %v45 = vpop.xlane.xlu0 %44
    %v46 = vld [vmem:[%s0] sm:$0xff]
    %vm47 = vcmp.gt.f32.partialorder %v46, 0.0
    %v48 = vmul.f32 %v45, %v46
    %v49 = vsel %vm47, %v48, 0.0
    %vm50 = vcmask 7168
    %v51 = vsel %vm50, %v49, 0.0
    %52 = vadd.xlane.f32.xlu0 %v51
    %v53 = vpop.xlane.xlu0 %52
    %v54 = vrot.slane %v53, 4
    %v55 = vadd.f32 %v53, %v54
    %v56 = vrot.slane %v55, 2
    %v57 = vadd.f32 %v55, %v56
    %v58 = vrot.slane %v57, 1
    %v59 = vadd.f32 %v57, %v58
    %s60 = vtos %v59
    %v61 = vstv %s60
    %62 = vst [vmem:[#allocation5] sm:$0xff] %v61
    // Predicated region
    $region18: #{tpu_custom_call.1} parent=1 // pred_check
      _
    $region19: #{tpu_custom_call.1} parent=1 // pred_check_branch
      %64 = sbr.rel (0) target = $region21
    $region20: #{tpu_custom_call.1} parent=1 // pred_region
      %s66 = ssub.s32 128, 128
      %67 = vsyncadd [#allocation4], %s66
      %s69 = sshll.u32 [#allocation5], 4
      %s70 = int_to_ptr.vmem [resolvable:$true] %s69
      %72 = dma.vmem_to_hbm [thread:$0]  %s70, 128, %s3, [#allocation4]
    $region21: #{tpu_custom_call.1} parent=1 // pred_fallthru
      _
    // Predicated region
    $region22: #{tpu_custom_call.1} parent=1 // pred_check
      _
    $region23: #{tpu_custom_call.1} parent=1 // pred_check_branch
      %74 = sbr.rel (0) target = $region25
    $region24: #{tpu_custom_call.1} parent=1 // pred_region
      %75 = dma.done [#allocation4], 128
    $region25: #{tpu_custom_call.1} parent=1 // pred_fallthru
      _
    %76 = vsyncpa [#allocation3], 1
    %77 = vsyncpa [#allocation4], 1

</llo_original>
